<compile_context>
chip_gen: v7x
topology: tpu7x:2x2x1
jax: 0.10.0
libtpu: 0.0.40
codegen_flags: <defaults>
</compile_context>

<pallas_src>
import math

import jax
import jax.numpy as jnp
from jax.experimental import pallas as pl
from jax.experimental.pallas import tpu as pltpu


NEG_SLOPE = 0.01  # torch.nn.LeakyReLU default negative_slope


def _leaky_relu(x):
    return jnp.where(x > 0, x, NEG_SLOPE * x)


def _round_up(n, m):
    return ((n + m - 1) // m) * m


def value_net_kernel(xT_ref, w1_ref, b1_ref, w2_ref, b2_ref, w3_ref, b3_ref, o_ref):
    """Fused 3-layer MLP, transposed layout (batch on the lane axis).

    xT_ref : [in_features, Bt]      bf16
    w1_ref : [hidden, in_features]  bf16 (PyTorch [out, in] layout)
    b1_ref : [hidden, 1]            f32
    w2_ref : [hidden, hidden]       bf16
    b2_ref : [hidden, 1]            f32
    w3_ref : [hidden, 1]            bf16
    b3_ref : [1]                    f32 scalar in SMEM
    o_ref  : [1, Bt]                f32 (lane-dense store)
    """
    xT = xT_ref[...].astype(jnp.float32)                       # [in, Bt]

    w1 = w1_ref[...].astype(jnp.float32)                       # [hid, in]
    h1 = jnp.dot(w1, xT, preferred_element_type=jnp.float32) + b1_ref[...]
    h1 = _leaky_relu(h1)                                       # [hid, Bt]

    w2 = w2_ref[...].astype(jnp.float32)                       # [hid, hid]
    h2 = jnp.dot(w2, h1, preferred_element_type=jnp.float32) + b2_ref[...]
    h2 = _leaky_relu(h2)                                       # [hid, Bt]

    # Last layer has a single output unit: VPU multiply + sublane reduction
    # (avoids an N=1 MXU pass whose result tile would be 127/128 garbage lanes).
    w3 = w3_ref[...].astype(jnp.float32)                       # [hid, 1]
    out = jnp.sum(h2 * w3, axis=0, keepdims=True) + b3_ref[0]  # [1, Bt]
    o_ref[...] = out.astype(o_ref.dtype)


def _pick_block_b(B, in_features):
    """Largest multiple of 128 that keeps the pipelined xT/out tiles well inside
    the smallest scoped-VMEM budget (conservative for v7x's 64 MiB VMEM)."""
    b_aligned = _round_up(B, 128)
    budget = 8 * 1024 * 1024
    per_col = 2 * in_features * 2 + 2 * 4   # double-buffered bf16 xT col + f32 out col
    cap = max(128, (budget // per_col) // 128 * 128)
    return min(1024, cap, b_aligned)


def value_network_forward(x, params, *, block_b=None):
    """x: [B, in_features] float. params from init_value_network_params.
    Returns [B, 1] float32."""
    B, in_features = x.shape
    hidden = params["w1"].shape[0]

    if block_b is None:
        block_b = _pick_block_b(B, in_features)
    block_b = max(128, _round_up(block_b, 128))   # keep lanes dense / (8,128)-legal
    B_pad = _round_up(B, block_b)
    num_blocks = B_pad // block_b

    # Transposed bf16 input: batch on the lane axis; pad batch to the tile size.
    xT = jnp.asarray(x).astype(jnp.bfloat16).T                 # [in_features, B]
    if B_pad != B:
        xT = jnp.pad(xT, ((0, 0), (0, B_pad - B)))

    flops = 2 * B_pad * (in_features * hidden + hidden * hidden + hidden)
    bytes_accessed = (
        xT.size * 2
        + (params["w1"].size + params["w2"].size + params["w3"].size) * 2
        + (params["b1"].size + params["b2"].size + params["b3"].size) * 4
        + B_pad * 4
    )

    full = lambda shape: pl.BlockSpec(shape, lambda i: (0, 0))

    out = pl.pallas_call(
        value_net_kernel,
        out_shape=jax.ShapeDtypeStruct((1, B_pad), jnp.float32),
        grid_spec=pltpu.PrefetchScalarGridSpec(
            num_scalar_prefetch=0,
            grid=(num_blocks,),
            in_specs=[
                pl.BlockSpec((in_features, block_b), lambda i: (0, i)),  # xT tile
                full((hidden, in_features)),                             # w1
                full((hidden, 1)),                                       # b1
                full((hidden, hidden)),                                  # w2
                full((hidden, 1)),                                       # b2
                full((hidden, 1)),                                       # w3
                pl.BlockSpec(memory_space=pltpu.MemorySpace.SMEM),       # b3 scalar
            ],
            out_specs=pl.BlockSpec((1, block_b), lambda i: (0, i)),      # lane-dense
        ),
        compiler_params=pltpu.CompilerParams(
            dimension_semantics=("parallel",),
            vmem_limit_bytes=32 * 1024 * 1024,
        ),
        cost_estimate=pl.CostEstimate(
            flops=flops, transcendentals=0, bytes_accessed=bytes_accessed),
    )(xT, params["w1"], params["b1"], params["w2"], params["b2"],
      params["w3"], params["b3"])

    return out[0, :B].reshape(B, 1)


def init_value_network_params(key, in_features, hidden_size):
    """Kaiming-normal init matching nn.init.kaiming_normal_(a=0.01), zero biases.
    Weights stored in PyTorch [out, in] layout (bf16); biases as columns (f32)."""
    gain = math.sqrt(2.0 / (1.0 + NEG_SLOPE ** 2))

    def kaiming(k, out_f, in_f):
        std = gain / math.sqrt(in_f)
        w = std * jax.random.normal(k, (out_f, in_f), dtype=jnp.float32)
        return w.astype(jnp.bfloat16)

    k1, k2, k3 = jax.random.split(key, 3)
    return {
        "w1": kaiming(k1, hidden_size, in_features),   # [hid, in]
        "b1": jnp.zeros((hidden_size, 1), jnp.float32),
        "w2": kaiming(k2, hidden_size, hidden_size),   # [hid, hid]
        "b2": jnp.zeros((hidden_size, 1), jnp.float32),
        "w3": kaiming(k3, 1, hidden_size).T,           # stored as [hid, 1]
        "b3": jnp.zeros((1,), jnp.float32),
    }


def reference_forward(x, params):
    """Pure-JAX reference using the same bf16-quantized inputs/weights, f32 math."""
    xf = jnp.asarray(x).astype(jnp.bfloat16).astype(jnp.float32)
    w1 = params["w1"].astype(jnp.float32)   # [hid, in]
    w2 = params["w2"].astype(jnp.float32)   # [hid, hid]
    w3 = params["w3"].astype(jnp.float32)   # [hid, 1]
    h1 = _leaky_relu(xf @ w1.T + params["b1"].T)
    h2 = _leaky_relu(h1 @ w2.T + params["b2"].T)
    return h2 @ w3 + params["b3"][0]


if __name__ == "__main__":
    key = jax.random.PRNGKey(0)
    k_params, k_x = jax.random.split(key)

    batch = 200           # not a multiple of 128: exercises the padding path
    in_features = 16
    hidden_size = 32

    params = init_value_network_params(k_params, in_features, hidden_size)
    x = jax.random.normal(k_x, (batch, in_features), dtype=jnp.float32)

    out = value_network_forward(x, params, block_b=128)   # 2-step grid
    out = jax.block_until_ready(out)

    ref = reference_forward(x, params)
    assert out.shape == (batch, 1), out.shape
    assert jnp.allclose(out, ref, atol=1e-4, rtol=1e-4), (
        "mismatch vs reference, max abs err = "
        + str(float(jnp.max(jnp.abs(out - ref)))))

    print("KERNEL_OK")
</pallas_src>

<mosaic_0001>
module attributes {stable_mosaic.version = 11 : i64} {
  func.func @value_net_kernel(%arg0: i32, %arg1: memref<16x128xbf16, #tpu.memory_space<vmem>>, %arg2: memref<32x16xbf16, #tpu.memory_space<vmem>>, %arg3: memref<32x1xf32, #tpu.memory_space<vmem>>, %arg4: memref<32x32xbf16, #tpu.memory_space<vmem>>, %arg5: memref<32x1xf32, #tpu.memory_space<vmem>>, %arg6: memref<32x1xbf16, #tpu.memory_space<vmem>>, %arg7: memref<1xf32, #tpu.memory_space<smem>>, %arg8: memref<1x128xf32, #tpu.memory_space<vmem>>) attributes {dimension_semantics = [#tpu.dimension_semantics<parallel>], iteration_bounds = array<i64: 2>, scalar_prefetch = 0 : i64, scratch_operands = 0 : i64, tpu.core_type = #tpu.core_type<tc>, window_params = [{transform_indices = @transform_0, window_bounds = array<i64: 16, 128>}, {pipeline_mode = #tpu.pipeline_mode<synchronous>, transform_indices = @transform_1, window_bounds = array<i64: 32, 16>}, {pipeline_mode = #tpu.pipeline_mode<synchronous>, transform_indices = @transform_2, window_bounds = array<i64: 32, 1>}, {pipeline_mode = #tpu.pipeline_mode<synchronous>, transform_indices = @transform_3, window_bounds = array<i64: 32, 32>}, {pipeline_mode = #tpu.pipeline_mode<synchronous>, transform_indices = @transform_4, window_bounds = array<i64: 32, 1>}, {pipeline_mode = #tpu.pipeline_mode<synchronous>, transform_indices = @transform_5, window_bounds = array<i64: 32, 1>}, {transform_indices = @transform_6, window_bounds = array<i64: 1>}, {transform_indices = @transform_7, window_bounds = array<i64: 1, 128>}]} {
    %c0 = arith.constant 0 : index
    %c0_0 = arith.constant 0 : index
    %0 = vector.load %arg1[%c0, %c0_0] : memref<16x128xbf16, #tpu.memory_space<vmem>>, vector<16x128xbf16>
    %1 = arith.extf %0 : vector<16x128xbf16> to vector<16x128xf32>
    %c0_1 = arith.constant 0 : index
    %c0_2 = arith.constant 0 : index
    %2 = vector.load %arg2[%c0_1, %c0_2] : memref<32x16xbf16, #tpu.memory_space<vmem>>, vector<32x16xbf16>
    %3 = arith.extf %2 : vector<32x16xbf16> to vector<32x16xf32>
    %cst = arith.constant dense<0.000000e+00> : vector<32x128xf32>
    %4 = tpu.matmul %3, %1, %cst {dimension_numbers = #tpu.dot_dimension_numbers<[1], [0], [0], [1], [0, 0, 1, 1], [], []>} : vector<32x16xf32>, vector<16x128xf32>, vector<32x128xf32> -> vector<32x128xf32>
    %c0_3 = arith.constant 0 : index
    %c0_4 = arith.constant 0 : index
    %5 = vector.load %arg3[%c0_3, %c0_4] : memref<32x1xf32, #tpu.memory_space<vmem>>, vector<32x1xf32>
    %6 = vector.broadcast %5 : vector<32x1xf32> to vector<32x128xf32>
    %7 = arith.addf %4, %6 : vector<32x128xf32>
    %cst_5 = arith.constant 0.000000e+00 : f32
    %8 = vector.broadcast %cst_5 : f32 to vector<32x128xf32>
    %9 = arith.cmpf ogt, %7, %8 : vector<32x128xf32>
    %cst_6 = arith.constant 0.00999999977 : f32
    %10 = vector.broadcast %cst_6 : f32 to vector<32x128xf32>
    %11 = arith.mulf %10, %7 : vector<32x128xf32>
    %12 = arith.select %9, %7, %11 : vector<32x128xi1>, vector<32x128xf32>
    %c0_7 = arith.constant 0 : index
    %c0_8 = arith.constant 0 : index
    %13 = vector.load %arg4[%c0_7, %c0_8] : memref<32x32xbf16, #tpu.memory_space<vmem>>, vector<32x32xbf16>
    %14 = arith.extf %13 : vector<32x32xbf16> to vector<32x32xf32>
    %cst_9 = arith.constant dense<0.000000e+00> : vector<32x128xf32>
    %15 = tpu.matmul %14, %12, %cst_9 {dimension_numbers = #tpu.dot_dimension_numbers<[1], [0], [0], [1], [0, 0, 1, 1], [], []>} : vector<32x32xf32>, vector<32x128xf32>, vector<32x128xf32> -> vector<32x128xf32>
    %c0_10 = arith.constant 0 : index
    %c0_11 = arith.constant 0 : index
    %16 = vector.load %arg5[%c0_10, %c0_11] : memref<32x1xf32, #tpu.memory_space<vmem>>, vector<32x1xf32>
    %17 = vector.broadcast %16 : vector<32x1xf32> to vector<32x128xf32>
    %18 = arith.addf %15, %17 : vector<32x128xf32>
    %cst_12 = arith.constant 0.000000e+00 : f32
    %19 = vector.broadcast %cst_12 : f32 to vector<32x128xf32>
    %20 = arith.cmpf ogt, %18, %19 : vector<32x128xf32>
    %cst_13 = arith.constant 0.00999999977 : f32
    %21 = vector.broadcast %cst_13 : f32 to vector<32x128xf32>
    %22 = arith.mulf %21, %18 : vector<32x128xf32>
    %23 = arith.select %20, %18, %22 : vector<32x128xi1>, vector<32x128xf32>
    %c0_14 = arith.constant 0 : index
    %c0_15 = arith.constant 0 : index
    %24 = vector.load %arg6[%c0_14, %c0_15] : memref<32x1xbf16, #tpu.memory_space<vmem>>, vector<32x1xbf16>
    %25 = arith.extf %24 : vector<32x1xbf16> to vector<32x1xf32>
    %26 = vector.broadcast %25 : vector<32x1xf32> to vector<32x128xf32>
    %27 = arith.mulf %23, %26 : vector<32x128xf32>
    %cst_16 = arith.constant dense<0.000000e+00> : vector<128xf32>
    %28 = vector.multi_reduction <add>, %27, %cst_16 [0] : vector<32x128xf32> to vector<128xf32>
    %29 = vector.shape_cast %28 : vector<128xf32> to vector<1x128xf32>
    %c0_17 = arith.constant 0 : index
    %30 = memref.load %arg7[%c0_17] : memref<1xf32, #tpu.memory_space<smem>>
    %31 = vector.broadcast %30 : f32 to vector<1x128xf32>
    %32 = arith.addf %29, %31 : vector<1x128xf32>
    %c0_18 = arith.constant 0 : index
    %c0_19 = arith.constant 0 : index
    %33 = vector.load %arg8[%c0_18, %c0_19] : memref<1x128xf32, #tpu.memory_space<vmem>>, vector<1x128xf32>
    tpu.vector_store %arg8[%c0_18, %c0_19], %32 {strides = array<i32>} : memref<1x128xf32, #tpu.memory_space<vmem>>, vector<1x128xf32>,
    return
  }
  func.func @transform_0(%arg0: i32) -> (i32, i32) {
    %c0_i32 = arith.constant 0 : i32
    %c0_i32_0 = arith.constant 0 : i32
    return %c0_i32, %arg0 : i32, i32
  }
  func.func @transform_1(%arg0: i32) -> (i32, i32) {
    %c0_i32 = arith.constant 0 : i32
    %c0_i32_0 = arith.constant 0 : i32
    %c0_i32_1 = arith.constant 0 : i32
    return %c0_i32, %c0_i32_0 : i32, i32
  }
  func.func @transform_2(%arg0: i32) -> (i32, i32) {
    %c0_i32 = arith.constant 0 : i32
    %c0_i32_0 = arith.constant 0 : i32
    %c0_i32_1 = arith.constant 0 : i32
    return %c0_i32, %c0_i32_0 : i32, i32
  }
  func.func @transform_3(%arg0: i32) -> (i32, i32) {
    %c0_i32 = arith.constant 0 : i32
    %c0_i32_0 = arith.constant 0 : i32
    %c0_i32_1 = arith.constant 0 : i32
    return %c0_i32, %c0_i32_0 : i32, i32
  }
  func.func @transform_4(%arg0: i32) -> (i32, i32) {
    %c0_i32 = arith.constant 0 : i32
    %c0_i32_0 = arith.constant 0 : i32
    %c0_i32_1 = arith.constant 0 : i32
    return %c0_i32, %c0_i32_0 : i32, i32
  }
  func.func @transform_5(%arg0: i32) -> (i32, i32) {
    %c0_i32 = arith.constant 0 : i32
    %c0_i32_0 = arith.constant 0 : i32
    %c0_i32_1 = arith.constant 0 : i32
    return %c0_i32, %c0_i32_0 : i32, i32
  }
  func.func @transform_6(%arg0: i32) -> i32 {
    %c0_i32 = arith.constant 0 : i32
    %c0_i32_0 = arith.constant 0 : i32
    return %c0_i32 : i32
  }
  func.func @transform_7(%arg0: i32) -> (i32, i32) {
    %c0_i32 = arith.constant 0 : i32
    %c0_i32_0 = arith.constant 0 : i32
    return %c0_i32, %arg0 : i32, i32
  }
}

</mosaic_0001>

<llo_original>
// kernel: tpu_custom_call.1
$region0: #{tpu_custom_call.1}
  #allocation0 [shape = 'u32[]', space=smem, size = 0x4, offset = 0x4, fixed_abs, tag = 'smem constant byte address 0x4 - core index']
  #allocation1 [shape = 'u32[144,128]{1,0:T(1,128)}', space=vmem, size = 0x12000, scoped, tag = 'internal scratch']
  #allocation2 [shape = 'f32[1]{0:T(128)S(6)}', space=smem, size = 0x200, scoped, tag = 'scoped memory for tpu_custom_call.1']
  %s0 = inlined_call_operand.vmem [shape: bf16[16,256], index: 0, kind: input, shape index: {}]
  %s1 = inlined_call_operand.vmem [shape: bf16[32,16], index: 1, kind: input, shape index: {}]
  %s2 = inlined_call_operand.vmem [shape: f32[32,1], index: 2, kind: input, shape index: {}]
  %s3 = inlined_call_operand.vmem [shape: bf16[32,32], index: 3, kind: input, shape index: {}]
  %s4 = inlined_call_operand.vmem [shape: f32[32,1], index: 4, kind: input, shape index: {}]
  %s5 = inlined_call_operand.vmem [shape: bf16[32,1], index: 5, kind: input, shape index: {}]
  %s6 = inlined_call_operand.<no memory space> [shape: f32[1], index: 6, kind: input, shape index: {}]
  %s7 = inlined_call_operand.hbm [shape: f32[1,256], index: 7, kind: output, shape index: {}]
  %s8 = sld [smem:[#allocation0]]
  $region102: #{tpu_custom_call.1} parent=0
    _
  %s10 = ssub.s32 1, %s8
  %s11 = scalar_select 0, %s10, %s8
  %12 = sst [smem:[#allocation2]] %s6
  $region1: #{tpu_custom_call.1} parent=0
    #allocation3 [shape = 'u8[8192]{0}', space=vmem, size = 0x2000, scoped, tag = 'input window, operand 0']
    #allocation4 [shape = 'u8[1024]{0}', space=vmem, size = 0x400, scoped, tag = 'output window, operand 0']
    #allocation5 [shape = 's32[2]{0}', space=sflag, size = 0x8, scoped, tag = 'scoped memory for tpu_custom_call.1']
    %13 = vsyncpa [#allocation5], 0
    %s14 = scalar_lea.sflag [#allocation5], 1
    %15 = vsyncpa %s14, 0
    loop: start=0, step=1, limit=4
    $region2: #{tpu_custom_call.1} parent=1 // loop_pre_header
      _
    $region3: #{tpu_custom_call.1} parent=1 // loop_header
      %s17 = sphi 0, %s21
      %p18 = scmp.ge.s32.totalorder %s17, 4
      %s27 = sphi 0, %s29
      %s30 = sphi 0, %s27
      %s31 = sphi 0, %s30
      %s47 = sphi 0, %s31
      %s51 = sphi 0, %s51
      %s53 = sphi 0, %s51
      %s54 = sphi 0, %s53
      %s68 = sphi 0, %s54
      %s72 = sphi 0, %s72
      %s74 = sphi 0, %s72
      %s75 = sphi 0, %s74
      %s89 = sphi 0, %s75
      %s93 = sphi 0, %s93
      %s95 = sphi 0, %s93
      %s96 = sphi 0, %s95
      %s110 = sphi 0, %s96
      %s114 = sphi 0, %s114
      %s116 = sphi 0, %s114
      %s117 = sphi 0, %s116
      %s131 = sphi 0, %s117
      %s135 = sphi 0, %s135
      %s137 = sphi 0, %s135
      %s138 = sphi 0, %s137
      %s152 = sphi 0, %s138
      %s156 = sphi 0, %s156
      %s158 = sphi 0, %s156
      %s159 = sphi 0, %s158
      %s173 = sphi 0, %s159
      %s179 = sphi 0, %s181
      %s182 = sphi 0, %s179
      %s183 = sphi 0, %s182
      %s199 = sphi 0, %s183
    $region4: #{tpu_custom_call.1} parent=1 // loop_header_branch
      %20 = sbr.rel (%p18) target = $region8
    $region5: #{tpu_custom_call.1} parent=1 // loop_body
      %s22 = ssub.s32 %s17, 1
      %s23 = ssub.s32 %s17, 2
      %s24 = sadd.s32 %s17, 1
      %s25 = ssub.s32 %s17, %s24
      %p26 = scmp.eq.s32.totalorder %s25, 0
      %s28 = sadd.s32 %s27, 1
      %s29 = scalar_select %p26, %s27, %s28
      %p32 = pneg %p26
      %p33 = scmp.eq.s32.totalorder %s17, 1
      %p34 = por %p32, %p33
      %p35 = scmp.ne.s32.totalorder %s27, %s30
      %p36 = scmp.eq.s32.totalorder %s17, 0
      %p37 = por %p35, %p36
      %p38 = scmp.ne.s32.totalorder %s27, %s30
      %p39 = scmp.eq.s32.totalorder %s22, 1
      %p40 = por %p38, %p39
      %p41 = scmp.ne.s32.totalorder %s30, %s31
      %p42 = scmp.eq.s32.totalorder %s22, 0
      %p43 = por %p41, %p42
      %p44 = scmp.ne.s32.totalorder %s30, %s31
      %p45 = scmp.eq.s32.totalorder %s23, 1
      %p46 = por %p44, %p45
      %p48 = scmp.ne.s32.totalorder %s31, %s47
      %p49 = scmp.eq.s32.totalorder %s23, 0
      %p50 = por %p48, %p49
      %s52 = sadd.s32 %s51, 1
      %p55 = scmp.eq.s32.totalorder %s17, 1
      %p56 = scmp.ne.s32.totalorder %s51, %s53
      %p57 = scmp.eq.s32.totalorder %s17, 0
      %p58 = por %p56, %p57
      %p59 = scmp.ne.s32.totalorder %s51, %s53
      %p60 = scmp.eq.s32.totalorder %s22, 1
      %p61 = por %p59, %p60
      %p62 = scmp.ne.s32.totalorder %s53, %s54
      %p63 = scmp.eq.s32.totalorder %s22, 0
      %p64 = por %p62, %p63
      %p65 = scmp.ne.s32.totalorder %s53, %s54
      %p66 = scmp.eq.s32.totalorder %s23, 1
      %p67 = por %p65, %p66
      %p69 = scmp.ne.s32.totalorder %s54, %s68
      %p70 = scmp.eq.s32.totalorder %s23, 0
      %p71 = por %p69, %p70
      %s73 = sadd.s32 %s72, 1
      %p76 = scmp.eq.s32.totalorder %s17, 1
      %p77 = scmp.ne.s32.totalorder %s72, %s74
      %p78 = scmp.eq.s32.totalorder %s17, 0
      %p79 = por %p77, %p78
      %p80 = scmp.ne.s32.totalorder %s72, %s74
      %p81 = scmp.eq.s32.totalorder %s22, 1
      %p82 = por %p80, %p81
      %p83 = scmp.ne.s32.totalorder %s74, %s75
      %p84 = scmp.eq.s32.totalorder %s22, 0
      %p85 = por %p83, %p84
      %p86 = scmp.ne.s32.totalorder %s74, %s75
      %p87 = scmp.eq.s32.totalorder %s23, 1
      %p88 = por %p86, %p87
      %p90 = scmp.ne.s32.totalorder %s75, %s89
      %p91 = scmp.eq.s32.totalorder %s23, 0
      %p92 = por %p90, %p91
      %s94 = sadd.s32 %s93, 1
      %p97 = scmp.eq.s32.totalorder %s17, 1
      %p98 = scmp.ne.s32.totalorder %s93, %s95
      %p99 = scmp.eq.s32.totalorder %s17, 0
      %p100 = por %p98, %p99
      %p101 = scmp.ne.s32.totalorder %s93, %s95
      %p102 = scmp.eq.s32.totalorder %s22, 1
      %p103 = por %p101, %p102
      %p104 = scmp.ne.s32.totalorder %s95, %s96
      %p105 = scmp.eq.s32.totalorder %s22, 0
      %p106 = por %p104, %p105
      %p107 = scmp.ne.s32.totalorder %s95, %s96
      %p108 = scmp.eq.s32.totalorder %s23, 1
      %p109 = por %p107, %p108
      %p111 = scmp.ne.s32.totalorder %s96, %s110
      %p112 = scmp.eq.s32.totalorder %s23, 0
      %p113 = por %p111, %p112
      %s115 = sadd.s32 %s114, 1
      %p118 = scmp.eq.s32.totalorder %s17, 1
      %p119 = scmp.ne.s32.totalorder %s114, %s116
      %p120 = scmp.eq.s32.totalorder %s17, 0
      %p121 = por %p119, %p120
      %p122 = scmp.ne.s32.totalorder %s114, %s116
      %p123 = scmp.eq.s32.totalorder %s22, 1
      %p124 = por %p122, %p123
      %p125 = scmp.ne.s32.totalorder %s116, %s117
      %p126 = scmp.eq.s32.totalorder %s22, 0
      %p127 = por %p125, %p126
      %p128 = scmp.ne.s32.totalorder %s116, %s117
      %p129 = scmp.eq.s32.totalorder %s23, 1
      %p130 = por %p128, %p129
      %p132 = scmp.ne.s32.totalorder %s117, %s131
      %p133 = scmp.eq.s32.totalorder %s23, 0
      %p134 = por %p132, %p133
      %s136 = sadd.s32 %s135, 1
      %p139 = scmp.eq.s32.totalorder %s17, 1
      %p140 = scmp.ne.s32.totalorder %s135, %s137
      %p141 = scmp.eq.s32.totalorder %s17, 0
      %p142 = por %p140, %p141
      %p143 = scmp.ne.s32.totalorder %s135, %s137
      %p144 = scmp.eq.s32.totalorder %s22, 1
      %p145 = por %p143, %p144
      %p146 = scmp.ne.s32.totalorder %s137, %s138
      %p147 = scmp.eq.s32.totalorder %s22, 0
      %p148 = por %p146, %p147
      %p149 = scmp.ne.s32.totalorder %s137, %s138
      %p150 = scmp.eq.s32.totalorder %s23, 1
      %p151 = por %p149, %p150
      %p153 = scmp.ne.s32.totalorder %s138, %s152
      %p154 = scmp.eq.s32.totalorder %s23, 0
      %p155 = por %p153, %p154
      %s157 = sadd.s32 %s156, 1
      %p160 = scmp.eq.s32.totalorder %s17, 1
      %p161 = scmp.ne.s32.totalorder %s156, %s158
      %p162 = scmp.eq.s32.totalorder %s17, 0
      %p163 = por %p161, %p162
      %p164 = scmp.ne.s32.totalorder %s156, %s158
      %p165 = scmp.eq.s32.totalorder %s22, 1
      %p166 = por %p164, %p165
      %p167 = scmp.ne.s32.totalorder %s158, %s159
      %p168 = scmp.eq.s32.totalorder %s22, 0
      %p169 = por %p167, %p168
      %p170 = scmp.ne.s32.totalorder %s158, %s159
      %p171 = scmp.eq.s32.totalorder %s23, 1
      %p172 = por %p170, %p171
      %p174 = scmp.ne.s32.totalorder %s159, %s173
      %p175 = scmp.eq.s32.totalorder %s23, 0
      %p176 = por %p174, %p175
      %s177 = ssub.s32 %s17, %s24
      %p178 = scmp.eq.s32.totalorder %s177, 0
      %s180 = sadd.s32 %s179, 1
      %s181 = scalar_select %p178, %s179, %s180
      %p184 = pneg %p178
      %p185 = scmp.eq.s32.totalorder %s17, 1
      %p186 = por %p184, %p185
      %p187 = scmp.ne.s32.totalorder %s179, %s182
      %p188 = scmp.eq.s32.totalorder %s17, 0
      %p189 = por %p187, %p188
      %p190 = scmp.ne.s32.totalorder %s179, %s182
      %p191 = scmp.eq.s32.totalorder %s22, 1
      %p192 = por %p190, %p191
      %p193 = scmp.ne.s32.totalorder %s182, %s183
      %p194 = scmp.eq.s32.totalorder %s22, 0
      %p195 = por %p193, %p194
      %p196 = scmp.ne.s32.totalorder %s182, %s183
      %p197 = scmp.eq.s32.totalorder %s23, 1
      %p198 = por %p196, %p197
      %p200 = scmp.ne.s32.totalorder %s183, %s199
      %p201 = scmp.eq.s32.totalorder %s23, 0
      %p202 = por %p200, %p201
      %p203 = scmp.le.s32.totalorder 1, %s17
      %p204 = scmp.lt.s32.totalorder %s17, 3
      %p205 = pnand %p203, %p204
      %p206 = pneg %p205
      // Predicated region
      $region9: #{tpu_custom_call.1} parent=5 // pred_check
        _
      $region10: #{tpu_custom_call.1} parent=5 // pred_check_branch
        %208 = sbr.rel (%p205) target = $region12
      $region11: #{tpu_custom_call.1} parent=5 // pred_region
        %s209 = ssub.s32 %s17, 1
        // Predicated region
        $region13: #{tpu_custom_call.1} parent=11 // pred_check
          %p210 = pneg %p64
        $region14: #{tpu_custom_call.1} parent=11 // pred_check_branch
          %212 = sbr.rel (%p210) target = $region16
        $region15: #{tpu_custom_call.1} parent=11 // pred_region
          _
        $region16: #{tpu_custom_call.1} parent=11 // pred_fallthru
          _
        // Predicated region
        $region17: #{tpu_custom_call.1} parent=11 // pred_check
          %p213 = pneg %p85
        $region18: #{tpu_custom_call.1} parent=11 // pred_check_branch
          %215 = sbr.rel (%p213) target = $region20
        $region19: #{tpu_custom_call.1} parent=11 // pred_region
          _
        $region20: #{tpu_custom_call.1} parent=11 // pred_fallthru
          _
        // Predicated region
        $region21: #{tpu_custom_call.1} parent=11 // pred_check
          %p216 = pneg %p106
        $region22: #{tpu_custom_call.1} parent=11 // pred_check_branch
          %218 = sbr.rel (%p216) target = $region24
        $region23: #{tpu_custom_call.1} parent=11 // pred_region
          _
        $region24: #{tpu_custom_call.1} parent=11 // pred_fallthru
          _
        // Predicated region
        $region25: #{tpu_custom_call.1} parent=11 // pred_check
          %p219 = pneg %p127
        $region26: #{tpu_custom_call.1} parent=11 // pred_check_branch
          %221 = sbr.rel (%p219) target = $region28
        $region27: #{tpu_custom_call.1} parent=11 // pred_region
          _
        $region28: #{tpu_custom_call.1} parent=11 // pred_fallthru
          _
        // Predicated region
        $region29: #{tpu_custom_call.1} parent=11 // pred_check
          %p222 = pneg %p148
        $region30: #{tpu_custom_call.1} parent=11 // pred_check_branch
          %224 = sbr.rel (%p222) target = $region32
        $region31: #{tpu_custom_call.1} parent=11 // pred_region
          _
        $region32: #{tpu_custom_call.1} parent=11 // pred_fallthru
          _
        // Predicated region
        $region33: #{tpu_custom_call.1} parent=11 // pred_check
          %p225 = pneg %p169
        $region34: #{tpu_custom_call.1} parent=11 // pred_check_branch
          %227 = sbr.rel (%p225) target = $region36
        $region35: #{tpu_custom_call.1} parent=11 // pred_region
          _
        $region36: #{tpu_custom_call.1} parent=11 // pred_fallthru
          _
      $region12: #{tpu_custom_call.1} parent=5 // pred_fallthru
        _
      %p228 = scmp.lt.s32.totalorder %s17, 2
      // Predicated region
      $region37: #{tpu_custom_call.1} parent=5 // pred_check
        %p229 = pneg %p228
      $region38: #{tpu_custom_call.1} parent=5 // pred_check_branch
        %231 = sbr.rel (%p229) target = $region40
      $region39: #{tpu_custom_call.1} parent=5 // pred_region
        // Predicated region
        $region41: #{tpu_custom_call.1} parent=39 // pred_check
          %p232 = pneg %p37
        $region42: #{tpu_custom_call.1} parent=39 // pred_check_branch
          %234 = sbr.rel (%p232) target = $region44
        $region43: #{tpu_custom_call.1} parent=39 // pred_region
          %s235 = sand.u32 %s27, 1
          %s236 = sand.u32 %s27, 1
          %s237 = smul.addr %s236, 8
          %s238 = scalar_lea.vmem [#allocation3], %s237
          %s239 = smul.addr %s17, 4
          %s240 = scalar_lea.vmem %s0, %s239
          // Predicated region
          $region45: #{tpu_custom_call.1} parent=43 // pred_check
            _
          $region46: #{tpu_custom_call.1} parent=43 // pred_check_branch
            %242 = sbr.rel (0) target = $region48
          $region47: #{tpu_custom_call.1} parent=43 // pred_region
            // Predicated region
            $region49: #{tpu_custom_call.1} parent=47 // pred_check
              _
            $region50: #{tpu_custom_call.1} parent=47 // pred_check_branch
              %244 = sbr.rel target = $region52
            $region51: #{tpu_custom_call.1} parent=47 // pred_region
              // Predicated region
              $region64: #{tpu_custom_call.1} parent=51 // pred_check
                _
              $region65: #{tpu_custom_call.1} parent=51 // pred_check_branch
                %261 = sbr.rel (0) target = $region67
              $region66: #{tpu_custom_call.1} parent=51 // pred_region
                loop: start=0, step=1, limit=1
                $region68: #{tpu_custom_call.1} parent=66 // loop_pre_header
                  _
                $region69: #{tpu_custom_call.1} parent=66 // loop_header
                  %s263 = sphi 0, %s267
                  %p264 = scmp.ge.s32.totalorder %s263, 1
                  %s268 = sphi %s240, %s240
                  %s269 = sphi %s238, %s238
                $region70: #{tpu_custom_call.1} parent=66 // loop_header_branch
                  %266 = sbr.rel (%p264) target = $region74
                $region71: #{tpu_custom_call.1} parent=66 // loop_body
                  _
                $region72: #{tpu_custom_call.1} parent=66 // loop_footer
                  %s267 = sadd.s32 1, %s263
                $region73: #{tpu_custom_call.1} parent=66 // loop_footer_branch
                  %262 = sbr.rel target = $region69
                $region74: #{tpu_custom_call.1} parent=66 // loop_exit
                  _
                loop: start=0, step=1, limit=1
                $region75: #{tpu_custom_call.1} parent=66 // loop_pre_header
                  _
                $region76: #{tpu_custom_call.1} parent=66 // loop_header
                  %s272 = sphi 0, %s276
                  %p273 = scmp.ge.s32.totalorder %s272, 1
                  %s277 = sphi %s240, %s240
                  %s278 = sphi %s238, %s238
                $region77: #{tpu_custom_call.1} parent=66 // loop_header_branch
                  %275 = sbr.rel (%p273) target = $region81
                $region78: #{tpu_custom_call.1} parent=66 // loop_body
                  %v279 = vld [vmem:[%s277] sm:$0xf]
                  %280 = vst [vmem:[%s278] sm:$0xf] %v279
                  %v281 = vld [vmem:[%s277 + $0x8] sm:$0xf]
                  %282 = vst [vmem:[%s278 + $0x4] sm:$0xf] %v281
                $region79: #{tpu_custom_call.1} parent=66 // loop_footer
                  %s276 = sadd.s32 1, %s272
                $region80: #{tpu_custom_call.1} parent=66 // loop_footer_branch
                  %271 = sbr.rel target = $region76
                $region81: #{tpu_custom_call.1} parent=66 // loop_exit
                  _
              $region67: #{tpu_custom_call.1} parent=51 // pred_fallthru
                _
            $region52: #{tpu_custom_call.1} parent=47 // pred_fallthru
              _
            // Predicated region
            $region53: #{tpu_custom_call.1} parent=47 // pred_check
              _
            $region54: #{tpu_custom_call.1} parent=47 // pred_check_branch
              %246 = sbr.rel (0) target = $region56
            $region55: #{tpu_custom_call.1} parent=47 // pred_region
              loop: start=0, step=1, limit=1
              $region57: #{tpu_custom_call.1} parent=55 // loop_pre_header
                _
              $region58: #{tpu_custom_call.1} parent=55 // loop_header
                %s249 = sphi 0, %s253
                %p250 = scmp.ge.s32.totalorder %s249, 1
                %s254 = sphi %s240, %s240
                %s255 = sphi %s238, %s238
              $region59: #{tpu_custom_call.1} parent=55 // loop_header_branch
                %252 = sbr.rel (%p250) target = $region63
              $region60: #{tpu_custom_call.1} parent=55 // loop_body
                %v256 = vld [vmem:[%s254] sm:$0xf]
                %257 = vst [vmem:[%s255] sm:$0xf] %v256
                %v258 = vld [vmem:[%s254 + $0x8] sm:$0xf]
                %259 = vst [vmem:[%s255 + $0x4] sm:$0xf] %v258
              $region61: #{tpu_custom_call.1} parent=55 // loop_footer
                %s253 = sadd.s32 1, %s249
              $region62: #{tpu_custom_call.1} parent=55 // loop_footer_branch
                %248 = sbr.rel target = $region58
              $region63: #{tpu_custom_call.1} parent=55 // loop_exit
                _
            $region56: #{tpu_custom_call.1} parent=47 // pred_fallthru
              _
          $region48: #{tpu_custom_call.1} parent=43 // pred_fallthru
            _
          %283 = vnop
        $region44: #{tpu_custom_call.1} parent=39 // pred_fallthru
          _
      $region40: #{tpu_custom_call.1} parent=5 // pred_fallthru
        _
      %p284 = scmp.le.s32.totalorder 1, %s17
      %p285 = scmp.lt.s32.totalorder %s17, 3
      %p286 = pnand %p284, %p285
      %p287 = pneg %p286
      // Predicated region
      $region82: #{tpu_custom_call.1} parent=5 // pred_check
        _
      $region83: #{tpu_custom_call.1} parent=5 // pred_check_branch
        %289 = sbr.rel (%p286) target = $region85
      $region84: #{tpu_custom_call.1} parent=5 // pred_region
        %s290 = ssub.s32 %s17, 1
        %s291 = sand.u32 %s30, 1
        %s292 = sand.u32 %s30, 1
        %s293 = smul.addr %s292, 8
        %s294 = scalar_lea.vmem [#allocation3], %s293
        // Predicated region
        $region86: #{tpu_custom_call.1} parent=84 // pred_check
          %p295 = pneg %p43
        $region87: #{tpu_custom_call.1} parent=84 // pred_check_branch
          %297 = sbr.rel (%p295) target = $region89
        $region88: #{tpu_custom_call.1} parent=84 // pred_region
          _
        $region89: #{tpu_custom_call.1} parent=84 // pred_fallthru
          _
        %s298 = sand.u32 %s30, 1
        %s299 = sand.u32 %s30, 1
        %s300 = smul.addr %s299, 8
        %s301 = scalar_lea.vmem [#allocation3], %s300
        %p302 = pneg %p43
        %p303 = pneg %p40
        %p304 = pneg %p64
        %p305 = pneg %p61
        %p306 = pneg %p85
        %p307 = pneg %p82
        %p308 = pneg %p106
        %p309 = pneg %p103
        %p310 = pneg %p127
        %p311 = pneg %p124
        %p312 = pneg %p148
        %p313 = pneg %p145
        %p314 = pneg %p169
        %p315 = pneg %p166
        %p316 = pneg %p195
        %p317 = pneg %p192
        %s318 = sand.u32 %s182, 1
        %s319 = scalar_lea.sflag [#allocation5], %s318
        %s320 = sand.u32 %s182, 1
        %s321 = scalar_lea.vmem [#allocation4], %s320
        %v322 = vld [vmem:[%s294] sm:$0xf]
        %v323 = vld [vmem:[%s294 + $0x4] sm:$0xf]
        %v324 = vunpack.c.l.bf16 %v322
        %v325 = vunpack.c.l.bf16 %v323
        %v326 = vld [vmem:[%s1] sm:$0xf]
        %v327 = vld [vmem:[%s1 + $0x4] sm:$0xf]
        %v328 = vld [vmem:[%s1 + $0x8] sm:$0xf]
        %v329 = vld [vmem:[%s1 + $0xc] sm:$0xf]
        %v330 = vunpack.c.l.bf16 %v326
        %v331 = vunpack.c.l.bf16 %v327
        %v332 = vunpack.c.l.bf16 %v328
        %v333 = vunpack.c.l.bf16 %v329
        %v334 = vld [vmem:[%s2] sm:$0xff]
        %v335 = vld [vmem:[%s2 + $0x8] sm:$0xff]
        %v336 = vld [vmem:[%s2 + $0x10] sm:$0xff]
        %v337 = vld [vmem:[%s2 + $0x18] sm:$0xff]
        %339 = vset.pattern.permute.xlu0 0
        %340 = vperm.xlu0 %339, %v334
        %v341 = vpop.permute.xlu0 %340
        %344 = vset.pattern.permute.xlu0 0
        %345 = vperm.xlu0 %344, %v335
        %v346 = vpop.permute.xlu0 %345
        %349 = vset.pattern.permute.xlu0 0
        %350 = vperm.xlu0 %349, %v336
        %v351 = vpop.permute.xlu0 %350
        %354 = vset.pattern.permute.xlu0 0
        %355 = vperm.xlu0 %354, %v337
        %v356 = vpop.permute.xlu0 %355
        %vm358 = vcmask 130048
        %v360 = vsel %vm358, %v330, 0
        %v363 = vsel %vm358, %v331, 0
        %v366 = vsel %vm358, %v332, 0
        %v369 = vsel %vm358, %v333, 0
        %371 = vmatprep.subr.mxu0 0.0
        %372 = vmatpush1.msra.mxu0 %v324
        %373 = vmatprep.subr.mxu0 0.0
        %374 = vmatpush1.msra.mxu0 %v325
        %375 = vmatprep.subr.mxu0 0.0
        %376 = vmatpush1.msra.mxu0 0.0
        %377 = vmatprep.subr.mxu0 0.0
        %378 = vmatpush1.msra.mxu0 0.0
        %379 = vmatprep.subr.mxu0 0.0
        %380 = vmatpush1.msra.mxu0 0.0
        %381 = vmatprep.subr.mxu0 0.0
        %382 = vmatpush1.msra.mxu0 0.0
        %383 = vmatprep.subr.mxu0 0.0
        %384 = vmatpush1.msra.mxu0 0.0
        %385 = vmatprep.subr.mxu0 0.0
        %386 = vmatpush1.msra.mxu0 0.0
        %387 = vmatprep.subr.mxu0 0.0
        %388 = vmatpush1.msra.mxu0 0.0
        %389 = vmatprep.subr.mxu0 0.0
        %390 = vmatpush1.msra.mxu0 0.0
        %391 = vmatprep.subr.mxu0 0.0
        %392 = vmatpush1.msra.mxu0 0.0
        %393 = vmatprep.subr.mxu0 0.0
        %394 = vmatpush1.msra.mxu0 0.0
        %395 = vmatprep.subr.mxu0 0.0
        %396 = vmatpush1.msra.mxu0 0.0
        %397 = vmatprep.subr.mxu0 0.0
        %398 = vmatpush1.msra.mxu0 0.0
        %399 = vmatprep.subr.mxu0 0.0
        %400 = vmatpush1.msra.mxu0 0.0
        %401 = vmatprep.subr.mxu0 0.0
        %402 = vmatpush1.msra.mxu0 0.0
        %403 = vmatprep.subr.mxu0 0.0
        %404 = vmatpush1.msra.mxu0 0.0
        %405 = vmatprep.subr.mxu0 0.0
        %406 = vmatpush1.msra.mxu0 0.0
        %407 = vmatprep.subr.mxu0 0.0
        %408 = vmatpush1.msra.mxu0 0.0
        %409 = vmatprep.subr.mxu0 0.0
        %410 = vmatpush1.msra.mxu0 0.0
        %411 = vmatprep.subr.mxu0 0.0
        %412 = vmatpush1.msra.mxu0 0.0
        %413 = vmatprep.subr.mxu0 0.0
        %414 = vmatpush1.msra.mxu0 0.0
        %415 = vmatprep.subr.mxu0 0.0
        %416 = vmatpush1.msra.mxu0 0.0
        %417 = vmatprep.subr.mxu0 0.0
        %418 = vmatpush1.msra.mxu0 0.0
        %419 = vmatprep.subr.mxu0 0.0
        %420 = vmatpush1.msra.mxu0 0.0
        %421 = vmatprep.subr.mxu0 0.0
        %422 = vmatpush1.msra.mxu0 0.0
        %423 = vmatprep.subr.mxu0 0.0
        %424 = vmatpush1.msra.mxu0 0.0
        %425 = vmatprep.subr.mxu0 0.0
        %426 = vmatpush1.msra.mxu0 0.0
        %427 = vmatprep.subr.mxu0 0.0
        %428 = vmatpush1.msra.mxu0 0.0
        %429 = vmatprep.subr.mxu0 0.0
        %430 = vmatpush1.msra.mxu0 0.0
        %431 = vmatprep.subr.mxu0 0.0
        %432 = vmatpush1.msra.mxu0 0.0
        %433 = vmatprep.subr.mxu0 0.0
        %434 = vmatpush1.msra.mxu0 0.0
        %435 = vmatprep.mubr.f32.mxu0 0.0
        %436 = vmatmul.mubr.f32.gmra.mrb[0].mxu0 %v360
        %v437 = vpop.f32.mrb[0].mxu0
        %v438 = vadd.f32 %v341, %v437
        %v439 = vpop.f32.mrb[0].mxu0
        %440 = vmatprep.mubr.f32.mxu0 0.0
        %441 = vmatmul.mubr.f32.gmra.mrb[0].mxu0 %v363
        %v442 = vpop.f32.mrb[0].mxu0
        %v443 = vadd.f32 %v346, %v442
        %v444 = vpop.f32.mrb[0].mxu0
        %445 = vmatprep.mubr.f32.mxu0 0.0
        %446 = vmatmul.mubr.f32.gmra.mrb[0].mxu0 %v366
        %v447 = vpop.f32.mrb[0].mxu0
        %v448 = vadd.f32 %v351, %v447
        %v449 = vpop.f32.mrb[0].mxu0
        %450 = vmatprep.mubr.f32.mxu0 0.0
        %451 = vmatmul.mubr.f32.gmra.mrb[0].mxu0 %v369
        %v452 = vpop.f32.mrb[0].mxu0
        %v453 = vadd.f32 %v356, %v452
        %v454 = vpop.f32.mrb[0].mxu0
        %455 = vdwg.mxu0
        %vm456 = vcmp.gt.f32.partialorder %v438, 0.0
        %vm457 = vcmp.gt.f32.partialorder %v443, 0.0
        %vm458 = vcmp.gt.f32.partialorder %v448, 0.0
        %vm459 = vcmp.gt.f32.partialorder %v453, 0.0
        %v460 = vmul.f32 %v438, 0.01
        %v461 = vmul.f32 %v443, 0.01
        %v462 = vmul.f32 %v448, 0.01
        %v463 = vmul.f32 %v453, 0.01
        %v464 = vsel %vm456, %v438, %v460
        %v465 = vsel %vm457, %v443, %v461
        %v466 = vsel %vm458, %v448, %v462
        %v467 = vsel %vm459, %v453, %v463
        %v468 = vld [vmem:[%s3] sm:$0xf]
        %v469 = vld [vmem:[%s3 + $0x4] sm:$0xf]
        %v470 = vld [vmem:[%s3 + $0x8] sm:$0xf]
        %v471 = vld [vmem:[%s3 + $0xc] sm:$0xf]
        %v472 = vunpack.c.l.bf16 %v468
        %v473 = vunpack.c.l.bf16 %v469
        %v474 = vunpack.c.l.bf16 %v470
        %v475 = vunpack.c.l.bf16 %v471
        %v476 = vld [vmem:[%s4] sm:$0xff]
        %v477 = vld [vmem:[%s4 + $0x8] sm:$0xff]
        %v478 = vld [vmem:[%s4 + $0x10] sm:$0xff]
        %v479 = vld [vmem:[%s4 + $0x18] sm:$0xff]
        %481 = vset.pattern.permute.xlu0 0
        %482 = vperm.xlu0 %481, %v476
        %v483 = vpop.permute.xlu0 %482
        %486 = vset.pattern.permute.xlu0 0
        %487 = vperm.xlu0 %486, %v477
        %v488 = vpop.permute.xlu0 %487
        %491 = vset.pattern.permute.xlu0 0
        %492 = vperm.xlu0 %491, %v478
        %v493 = vpop.permute.xlu0 %492
        %496 = vset.pattern.permute.xlu0 0
        %497 = vperm.xlu0 %496, %v479
        %v498 = vpop.permute.xlu0 %497
        %vm500 = vcmask 261120
        %v502 = vsel %vm500, %v472, 0
        %v505 = vsel %vm500, %v473, 0
        %v508 = vsel %vm500, %v474, 0
        %v511 = vsel %vm500, %v475, 0
        %513 = vmatprep.subr.mxu0 0.0
        %514 = vmatpush1.msra.mxu0 %v464
        %515 = vmatprep.subr.mxu0 0.0
        %516 = vmatpush1.msra.mxu0 %v465
        %517 = vmatprep.subr.mxu0 0.0
        %518 = vmatpush1.msra.mxu0 %v466
        %519 = vmatprep.subr.mxu0 0.0
        %520 = vmatpush1.msra.mxu0 %v467
        %521 = vmatprep.subr.mxu0 0.0
        %522 = vmatpush1.msra.mxu0 0.0
        %523 = vmatprep.subr.mxu0 0.0
        %524 = vmatpush1.msra.mxu0 0.0
        %525 = vmatprep.subr.mxu0 0.0
        %526 = vmatpush1.msra.mxu0 0.0
        %527 = vmatprep.subr.mxu0 0.0
        %528 = vmatpush1.msra.mxu0 0.0
        %529 = vmatprep.subr.mxu0 0.0
        %530 = vmatpush1.msra.mxu0 0.0
        %531 = vmatprep.subr.mxu0 0.0
        %532 = vmatpush1.msra.mxu0 0.0
        %533 = vmatprep.subr.mxu0 0.0
        %534 = vmatpush1.msra.mxu0 0.0
        %535 = vmatprep.subr.mxu0 0.0
        %536 = vmatpush1.msra.mxu0 0.0
        %537 = vmatprep.subr.mxu0 0.0
        %538 = vmatpush1.msra.mxu0 0.0
        %539 = vmatprep.subr.mxu0 0.0
        %540 = vmatpush1.msra.mxu0 0.0
        %541 = vmatprep.subr.mxu0 0.0
        %542 = vmatpush1.msra.mxu0 0.0
        %543 = vmatprep.subr.mxu0 0.0
        %544 = vmatpush1.msra.mxu0 0.0
        %545 = vmatprep.subr.mxu0 0.0
        %546 = vmatpush1.msra.mxu0 0.0
        %547 = vmatprep.subr.mxu0 0.0
        %548 = vmatpush1.msra.mxu0 0.0
        %549 = vmatprep.subr.mxu0 0.0
        %550 = vmatpush1.msra.mxu0 0.0
        %551 = vmatprep.subr.mxu0 0.0
        %552 = vmatpush1.msra.mxu0 0.0
        %553 = vmatprep.subr.mxu0 0.0
        %554 = vmatpush1.msra.mxu0 0.0
        %555 = vmatprep.subr.mxu0 0.0
        %556 = vmatpush1.msra.mxu0 0.0
        %557 = vmatprep.subr.mxu0 0.0
        %558 = vmatpush1.msra.mxu0 0.0
        %559 = vmatprep.subr.mxu0 0.0
        %560 = vmatpush1.msra.mxu0 0.0
        %561 = vmatprep.subr.mxu0 0.0
        %562 = vmatpush1.msra.mxu0 0.0
        %563 = vmatprep.subr.mxu0 0.0
        %564 = vmatpush1.msra.mxu0 0.0
        %565 = vmatprep.subr.mxu0 0.0
        %566 = vmatpush1.msra.mxu0 0.0
        %567 = vmatprep.subr.mxu0 0.0
        %568 = vmatpush1.msra.mxu0 0.0
        %569 = vmatprep.subr.mxu0 0.0
        %570 = vmatpush1.msra.mxu0 0.0
        %571 = vmatprep.subr.mxu0 0.0
        %572 = vmatpush1.msra.mxu0 0.0
        %573 = vmatprep.subr.mxu0 0.0
        %574 = vmatpush1.msra.mxu0 0.0
        %575 = vmatprep.subr.mxu0 0.0
        %576 = vmatpush1.msra.mxu0 0.0
        %577 = vmatprep.mubr.f32.mxu0 0.0
        %578 = vmatmul.mubr.f32.gmra.mrb[0].mxu0 %v502
        %v579 = vpop.f32.mrb[0].mxu0
        %v580 = vadd.f32 %v483, %v579
        %v581 = vpop.f32.mrb[0].mxu0
        %582 = vmatprep.mubr.f32.mxu0 0.0
        %583 = vmatmul.mubr.f32.gmra.mrb[0].mxu0 %v505
        %v584 = vpop.f32.mrb[0].mxu0
        %v585 = vadd.f32 %v488, %v584
        %v586 = vpop.f32.mrb[0].mxu0
        %587 = vmatprep.mubr.f32.mxu0 0.0
        %588 = vmatmul.mubr.f32.gmra.mrb[0].mxu0 %v508
        %v589 = vpop.f32.mrb[0].mxu0
        %v590 = vadd.f32 %v493, %v589
        %v591 = vpop.f32.mrb[0].mxu0
        %592 = vmatprep.mubr.f32.mxu0 0.0
        %593 = vmatmul.mubr.f32.gmra.mrb[0].mxu0 %v511
        %v594 = vpop.f32.mrb[0].mxu0
        %v595 = vadd.f32 %v498, %v594
        %v596 = vpop.f32.mrb[0].mxu0
        %597 = vdwg.mxu0
        %vm598 = vcmp.gt.f32.partialorder %v580, 0.0
        %vm599 = vcmp.gt.f32.partialorder %v585, 0.0
        %vm600 = vcmp.gt.f32.partialorder %v590, 0.0
        %vm601 = vcmp.gt.f32.partialorder %v595, 0.0
        %v602 = vmul.f32 %v580, 0.01
        %v603 = vmul.f32 %v585, 0.01
        %v604 = vmul.f32 %v590, 0.01
        %v605 = vmul.f32 %v595, 0.01
        %v606 = vsel %vm598, %v580, %v602
        %v607 = vsel %vm599, %v585, %v603
        %v608 = vsel %vm600, %v590, %v604
        %v609 = vsel %vm601, %v595, %v605
        %v610 = vld [vmem:[%s5] sm:$0xf]
        %v611 = vld [vmem:[%s5 + $0x4] sm:$0xf]
        %v612 = vld [vmem:[%s5 + $0x8] sm:$0xf]
        %v613 = vld [vmem:[%s5 + $0xc] sm:$0xf]
        %v614 = vunpack.c.l.bf16 %v610
        %v615 = vunpack.c.l.bf16 %v611
        %v616 = vunpack.c.l.bf16 %v612
        %v617 = vunpack.c.l.bf16 %v613
        %619 = vset.pattern.permute.xlu0 0
        %620 = vperm.xlu0 %619, %v614
        %v621 = vpop.permute.xlu0 %620
        %624 = vset.pattern.permute.xlu0 0
        %625 = vperm.xlu0 %624, %v615
        %v626 = vpop.permute.xlu0 %625
        %629 = vset.pattern.permute.xlu0 0
        %630 = vperm.xlu0 %629, %v616
        %v631 = vpop.permute.xlu0 %630
        %634 = vset.pattern.permute.xlu0 0
        %635 = vperm.xlu0 %634, %v617
        %v636 = vpop.permute.xlu0 %635
        %v638 = vmul.f32 %v606, %v621
        %v639 = vmul.f32 %v607, %v626
        %v640 = vmul.f32 %v608, %v631
        %v641 = vmul.f32 %v609, %v636
        %v642 = vadd.f32 %v638, %v639
        %v643 = vadd.f32 %v642, %v640
        %v644 = vadd.f32 %v643, %v641
        %v645 = vrot.slane %v644, 4
        %v646 = vadd.f32 %v644, %v645
        %v647 = vrot.slane %v646, 2
        %v648 = vadd.f32 %v646, %v647
        %v649 = vrot.slane %v648, 1
        %v650 = vadd.f32 %v648, %v649
        %s651 = sld [smem:[#allocation2]]
        %v652 = vstv %s651
        %v653 = vadd.f32 %v650, %v652
        %654 = vst [vmem:[%s321] sm:$0x1] %v653
        %s655 = sand.u32 %s182, 1
        %s656 = scalar_lea.sflag [#allocation5], %s655
        %s657 = sand.u32 %s182, 1
        %s658 = scalar_lea.vmem [#allocation4], %s657
        // Predicated region
        $region90: #{tpu_custom_call.1} parent=84 // pred_check
          %p659 = pneg %p192
        $region91: #{tpu_custom_call.1} parent=84 // pred_check_branch
          %661 = sbr.rel (%p659) target = $region93
        $region92: #{tpu_custom_call.1} parent=84 // pred_region
          %s663 = ssub.s32 16, 16
          %664 = vsyncadd %s656, %s663
          %s665 = smul.addr %s22, 16
          %s666 = scalar_lea.hbm %s7, %s665
          %s668 = sshll.u32 %s658, 4
          %s669 = int_to_ptr.vmem [resolvable:$true] %s668
          %671 = dma.vmem_to_hbm [thread:$0]  %s669, 16, %s666, %s656
        $region93: #{tpu_custom_call.1} parent=84 // pred_fallthru
          _
      $region85: #{tpu_custom_call.1} parent=5 // pred_fallthru
        _
      %p672 = scmp.le.s32.totalorder 2, %s17
      // Predicated region
      $region94: #{tpu_custom_call.1} parent=5 // pred_check
        %p673 = pneg %p672
      $region95: #{tpu_custom_call.1} parent=5 // pred_check_branch
        %675 = sbr.rel (%p673) target = $region97
      $region96: #{tpu_custom_call.1} parent=5 // pred_region
        %s676 = ssub.s32 %s17, 2
        // Predicated region
        $region98: #{tpu_custom_call.1} parent=96 // pred_check
          %p677 = pneg %p198
        $region99: #{tpu_custom_call.1} parent=96 // pred_check_branch
          %679 = sbr.rel (%p677) target = $region101
        $region100: #{tpu_custom_call.1} parent=96 // pred_region
          %s680 = sand.u32 %s183, 1
          %s681 = scalar_lea.sflag [#allocation5], %s680
          %s682 = sand.u32 %s183, 1
          %s683 = scalar_lea.vmem [#allocation4], %s682
          %684 = dma.done %s681, 16
        $region101: #{tpu_custom_call.1} parent=96 // pred_fallthru
          _
      $region97: #{tpu_custom_call.1} parent=5 // pred_fallthru
        _
    $region6: #{tpu_custom_call.1} parent=1 // loop_footer
      %s21 = sadd.s32 1, %s17
    $region7: #{tpu_custom_call.1} parent=1 // loop_footer_branch
      %16 = sbr.rel target = $region3
    $region8: #{tpu_custom_call.1} parent=1 // loop_exit
      _
    %685 = vsyncpa [#allocation5], 1
    %s686 = scalar_lea.sflag [#allocation5], 1
    %687 = vsyncpa %s686, 1

</llo_original>
